<compile_context>
chip_gen: v5e
topology: v5e:2x2
jax: 0.10.0
libtpu: 0.0.40
codegen_flags: <defaults>
</compile_context>

<pallas_src>
import functools

import jax
import jax.numpy as jnp
from jax.experimental import pallas as pl
from jax.experimental.pallas import tpu as pltpu


def _round_up(x, m):
    return (x + m - 1) // m * m


def _cdiv(a, b):
    return (a + b - 1) // b


def _pose_regressor_kernel(x_ref, w1_ref, b1_ref, w2_ref, b2_ref, o_ref, *,
                           approximate_gelu):
    # x streams in its native dtype; cast to the matmul dtype in-register
    # (avoids a wrapper-side pad+cast HBM round trip on the activations).
    x = x_ref[...].astype(w1_ref.dtype)

    # Hidden projection on the MXU: [TB, D] @ [D, CH] -> f32 accumulation.
    h = jnp.dot(x, w1_ref[...], preferred_element_type=jnp.float32)
    h = h + b1_ref[...]  # b1 is [1, CH] f32, broadcasts over the batch tile.

    if approximate_gelu:
        # tanh-form GELU: transcendental runs on the EUP slot (idle otherwise)
        # rather than a long erf VALU polynomial.  Kept in f32 so it is also
        # the right choice on v5e (no bf16 VPU/EUP).
        h = jax.nn.gelu(h, approximate=True)
    else:
        # Exact erf GELU (matches torch.nn.functional.gelu default).
        inv_sqrt2 = jnp.float32(0.7071067811865476)
        h = 0.5 * h * (1.0 + jax.lax.erf(h * inv_sqrt2))

    # Output projection: [TB, CH] @ [CH, OUT_PAD] -> f32 accumulation.
    y = jnp.dot(h.astype(w2_ref.dtype), w2_ref[...],
                preferred_element_type=jnp.float32)
    y = y + b2_ref[...]  # b2 is [1, OUT_PAD] f32.
    o_ref[...] = y.astype(o_ref.dtype)  # narrow, lane-dense (unmasked) store.


@functools.partial(
    jax.jit,
    static_argnames=("block_b", "compute_dtype", "out_dtype",
                     "approximate_gelu"))
def pose_regressor(x, w1, b1, w2, b2, *, block_b=512,
                   compute_dtype=jnp.bfloat16, out_dtype=jnp.bfloat16,
                   approximate_gelu=True):
    """x: [B, D], w1: [D, CH], b1: [1, CH], w2: [CH, OUT], b2: [1, OUT]."""
    B, D = x.shape
    CH = w1.shape[1]
    OUT = w2.shape[1]

    # Lane-dense output: pad OUT up to a multiple of 128.
    OUT_PAD = _round_up(OUT, 128)

    # Batch tiling: TB a multiple of 16; prefer >= 2 tiles when the batch
    # allows so the "parallel" grid axis can shard across v7x's 2 TCs.
    B16 = _round_up(B, 16)
    n_tiles = max(1, _cdiv(B16, block_b))
    if n_tiles == 1 and B16 >= 32:
        n_tiles = 2
    TB = _round_up(_cdiv(B16, n_tiles), 16)
    B_pad = _round_up(B, TB)
    grid = (B_pad // TB,)

    # Activations stay in their native dtype; only materialize a padded copy
    # when the batch does not divide the tile.
    x_in = x
    if B_pad != B:
        x_in = jnp.zeros((B_pad, D), x.dtype).at[:B].set(x)

    # Weights: cast matmul operands to bf16; biases stay f32; lane-pad the
    # output projection so stores are unmasked 128-lane vst.
    w1_c = w1.astype(compute_dtype)
    b1_f = b1.reshape(1, CH).astype(jnp.float32)
    if OUT_PAD != OUT:
        w2_p = jnp.zeros((CH, OUT_PAD), compute_dtype).at[:, :OUT].set(
            w2.astype(compute_dtype))
        b2_p = jnp.zeros((1, OUT_PAD), jnp.float32).at[:, :OUT].set(
            b2.reshape(1, OUT).astype(jnp.float32))
    else:
        w2_p = w2.astype(compute_dtype)
        b2_p = b2.reshape(1, OUT).astype(jnp.float32)

    out_itemsize = jnp.dtype(out_dtype).itemsize
    cost = pl.CostEstimate(
        flops=2 * B_pad * (D * CH + CH * OUT_PAD),
        transcendentals=B_pad * CH,  # one tanh/erf per hidden activation
        bytes_accessed=int(x_in.size * x_in.dtype.itemsize
                           + w1_c.size * w1_c.dtype.itemsize
                           + w2_p.size * w2_p.dtype.itemsize
                           + b1_f.size * 4 + b2_p.size * 4
                           + B_pad * OUT_PAD * out_itemsize),
    )

    y = pl.pallas_call(
        functools.partial(_pose_regressor_kernel,
                          approximate_gelu=approximate_gelu),
        out_shape=jax.ShapeDtypeStruct((B_pad, OUT_PAD), out_dtype),
        grid=grid,
        in_specs=[
            pl.BlockSpec((TB, D), lambda i: (i, 0)),        # x: streams per tile
            pl.BlockSpec((D, CH), lambda i: (0, 0)),        # w1: VMEM-resident
            pl.BlockSpec((1, CH), lambda i: (0, 0)),        # b1
            pl.BlockSpec((CH, OUT_PAD), lambda i: (0, 0)),  # w2 (lane-padded)
            pl.BlockSpec((1, OUT_PAD), lambda i: (0, 0)),   # b2 (lane-padded)
        ],
        out_specs=pl.BlockSpec((TB, OUT_PAD), lambda i: (i, 0)),
        compiler_params=pltpu.CompilerParams(
            dimension_semantics=("parallel",),  # megacore-shard batch tiles
        ),
        cost_estimate=cost,
    )(x_in, w1_c, b1_f, w2_p, b2_p)

    # Strip batch / lane padding outside the kernel; cast back to x.dtype.
    return y[:B, :OUT].astype(x.dtype)


def _xavier_uniform(key, shape, dtype=jnp.float32):
    """Matches nn.init.xavier_uniform_ for a weight of shape [fan_in, fan_out]."""
    fan_in, fan_out = shape
    limit = (6.0 / (fan_in + fan_out)) ** 0.5
    return jax.random.uniform(key, shape, dtype, minval=-limit, maxval=limit)


def init_pose_regressor_params(key, decoder_dim, output_dim, ch=1024):
    k1, k2, k3, k4 = jax.random.split(key, 4)
    w1 = _xavier_uniform(k1, (decoder_dim, ch))
    w2 = _xavier_uniform(k2, (ch, output_dim))
    # Biases keep the PyTorch nn.Linear default init (uniform +/- 1/sqrt(fan_in)).
    b1 = jax.random.uniform(k3, (1, ch), jnp.float32,
                            minval=-(decoder_dim ** -0.5),
                            maxval=decoder_dim ** -0.5)
    b2 = jax.random.uniform(k4, (1, output_dim), jnp.float32,
                            minval=-(ch ** -0.5), maxval=ch ** -0.5)
    return w1, b1, w2, b2


def pose_regressor_ref(x, w1, b1, w2, b2, compute_dtype=jnp.float32,
                       approximate=False):
    """Pure-JAX reference with the same matmul operand dtype / f32 accumulation."""
    xc = x.astype(compute_dtype)
    w1c = w1.astype(compute_dtype)
    w2c = w2.astype(compute_dtype)
    h = (jnp.dot(xc, w1c, preferred_element_type=jnp.float32)
         + b1.astype(jnp.float32))
    h = jax.nn.gelu(h, approximate=approximate)
    y = (jnp.dot(h.astype(compute_dtype), w2c,
                 preferred_element_type=jnp.float32)
         + b2.astype(jnp.float32))
    return y.astype(x.dtype)


if __name__ == "__main__":
    # Small shapes consistent with the module: decoder_dim=32 features,
    # output_dim=7 (3-D translation + 4-D quaternion pose head).
    B, decoder_dim, output_dim = 8, 32, 7

    key = jax.random.PRNGKey(0)
    kx, kp = jax.random.split(key)
    x = jax.random.normal(kx, (B, decoder_dim), jnp.float32)
    w1, b1, w2, b2 = init_pose_regressor_params(kp, decoder_dim, output_dim)

    # Default fast path: tanh-approx GELU (EUP), bf16 matmul operands/output.
    y = pose_regressor(x, w1, b1, w2, b2)
    y = jax.block_until_ready(y)
    assert y.shape == (B, output_dim)

    y_ref_approx = pose_regressor_ref(x, w1, b1, w2, b2,
                                      compute_dtype=jnp.bfloat16,
                                      approximate=True)
    assert jnp.allclose(y, y_ref_approx, atol=2e-2, rtol=2e-2), \
        "mismatch vs bf16-operand tanh-GELU reference"

    y_ref_f32 = pose_regressor_ref(x, w1, b1, w2, b2,
                                   compute_dtype=jnp.float32,
                                   approximate=False)
    assert jnp.allclose(y, y_ref_f32, atol=5e-2, rtol=5e-2), \
        "mismatch vs exact f32 reference"

    # Exact-erf path (bit-parity with torch's default F.gelu) also compiles.
    y_exact = pose_regressor(x, w1, b1, w2, b2, approximate_gelu=False)
    y_exact = jax.block_until_ready(y_exact)
    y_ref_exact = pose_regressor_ref(x, w1, b1, w2, b2,
                                     compute_dtype=jnp.bfloat16,
                                     approximate=False)
    assert jnp.allclose(y_exact, y_ref_exact, atol=2e-2, rtol=2e-2), \
        "mismatch vs bf16-operand exact-GELU reference"

    print("KERNEL_OK")
</pallas_src>

<mosaic_0001>
module attributes {stable_mosaic.version = 11 : i64} {
  func.func @_pose_regressor_kernel(%arg0: i32, %arg1: memref<16x32xf32, #tpu.memory_space<vmem>>, %arg2: memref<32x1024xbf16, #tpu.memory_space<vmem>>, %arg3: memref<1x1024xf32, #tpu.memory_space<vmem>>, %arg4: memref<1024x128xbf16, #tpu.memory_space<vmem>>, %arg5: memref<1x128xf32, #tpu.memory_space<vmem>>, %arg6: memref<16x128xbf16, #tpu.memory_space<vmem>>) attributes {dimension_semantics = [#tpu.dimension_semantics<parallel>], iteration_bounds = array<i64: 1>, scalar_prefetch = 0 : i64, scratch_operands = 0 : i64, tpu.core_type = #tpu.core_type<tc>, window_params = [{transform_indices = @transform_0, window_bounds = array<i64: 16, 32>}, {pipeline_mode = #tpu.pipeline_mode<synchronous>, transform_indices = @transform_1, window_bounds = array<i64: 32, 1024>}, {pipeline_mode = #tpu.pipeline_mode<synchronous>, transform_indices = @transform_2, window_bounds = array<i64: 1, 1024>}, {pipeline_mode = #tpu.pipeline_mode<synchronous>, transform_indices = @transform_3, window_bounds = array<i64: 1024, 128>}, {pipeline_mode = #tpu.pipeline_mode<synchronous>, transform_indices = @transform_4, window_bounds = array<i64: 1, 128>}, {transform_indices = @transform_5, window_bounds = array<i64: 16, 128>}]} {
    %c0 = arith.constant 0 : index
    %c0_0 = arith.constant 0 : index
    %0 = vector.load %arg1[%c0, %c0_0] : memref<16x32xf32, #tpu.memory_space<vmem>>, vector<16x32xf32>
    %1 = arith.truncf %0 : vector<16x32xf32> to vector<16x32xbf16>
    %c0_1 = arith.constant 0 : index
    %c0_2 = arith.constant 0 : index
    %2 = vector.load %arg2[%c0_1, %c0_2] : memref<32x1024xbf16, #tpu.memory_space<vmem>>, vector<32x1024xbf16>
    %cst = arith.constant dense<0.000000e+00> : vector<16x1024xf32>
    %3 = tpu.matmul %1, %2, %cst {dimension_numbers = #tpu.dot_dimension_numbers<[1], [0], [0], [1], [0, 0, 1, 1], [], []>} : vector<16x32xbf16>, vector<32x1024xbf16>, vector<16x1024xf32> -> vector<16x1024xf32>
    %c0_3 = arith.constant 0 : index
    %c0_4 = arith.constant 0 : index
    %4 = vector.load %arg3[%c0_3, %c0_4] : memref<1x1024xf32, #tpu.memory_space<vmem>>, vector<1x1024xf32>
    %5 = vector.broadcast %4 : vector<1x1024xf32> to vector<16x1024xf32>
    %6 = arith.addf %3, %5 : vector<16x1024xf32>
    %7 = arith.mulf %6, %6 : vector<16x1024xf32>
    %8 = arith.mulf %6, %7 : vector<16x1024xf32>
    %cst_5 = arith.constant 4.471500e-02 : f32
    %9 = vector.broadcast %cst_5 : f32 to vector<16x1024xf32>
    %10 = arith.mulf %9, %8 : vector<16x1024xf32>
    %11 = arith.addf %6, %10 : vector<16x1024xf32>
    %cst_6 = arith.constant 0.797884583 : f32
    %12 = vector.broadcast %cst_6 : f32 to vector<16x1024xf32>
    %13 = arith.mulf %12, %11 : vector<16x1024xf32>
    %14 = math.tanh %13 : vector<16x1024xf32>
    %cst_7 = arith.constant 1.000000e+00 : f32
    %15 = vector.broadcast %cst_7 : f32 to vector<16x1024xf32>
    %16 = arith.addf %15, %14 : vector<16x1024xf32>
    %cst_8 = arith.constant 5.000000e-01 : f32
    %17 = vector.broadcast %cst_8 : f32 to vector<16x1024xf32>
    %18 = arith.mulf %17, %16 : vector<16x1024xf32>
    %19 = arith.mulf %6, %18 : vector<16x1024xf32>
    %20 = arith.truncf %19 : vector<16x1024xf32> to vector<16x1024xbf16>
    %c0_9 = arith.constant 0 : index
    %c0_10 = arith.constant 0 : index
    %21 = vector.load %arg4[%c0_9, %c0_10] : memref<1024x128xbf16, #tpu.memory_space<vmem>>, vector<1024x128xbf16>
    %cst_11 = arith.constant dense<0.000000e+00> : vector<16x128xf32>
    %22 = tpu.matmul %20, %21, %cst_11 {dimension_numbers = #tpu.dot_dimension_numbers<[1], [0], [0], [1], [0, 0, 1, 1], [], []>} : vector<16x1024xbf16>, vector<1024x128xbf16>, vector<16x128xf32> -> vector<16x128xf32>
    %c0_12 = arith.constant 0 : index
    %c0_13 = arith.constant 0 : index
    %23 = vector.load %arg5[%c0_12, %c0_13] : memref<1x128xf32, #tpu.memory_space<vmem>>, vector<1x128xf32>
    %24 = vector.broadcast %23 : vector<1x128xf32> to vector<16x128xf32>
    %25 = arith.addf %22, %24 : vector<16x128xf32>
    %26 = arith.truncf %25 : vector<16x128xf32> to vector<16x128xbf16>
    %c0_14 = arith.constant 0 : index
    %c0_15 = arith.constant 0 : index
    %27 = vector.load %arg6[%c0_14, %c0_15] : memref<16x128xbf16, #tpu.memory_space<vmem>>, vector<16x128xbf16>
    tpu.vector_store %arg6[%c0_14, %c0_15], %26 {strides = array<i32>} : memref<16x128xbf16, #tpu.memory_space<vmem>>, vector<16x128xbf16>,
    return
  }
  func.func @transform_0(%arg0: i32) -> (i32, i32) {
    %c0_i32 = arith.constant 0 : i32
    %c0_i32_0 = arith.constant 0 : i32
    return %arg0, %c0_i32 : i32, i32
  }
  func.func @transform_1(%arg0: i32) -> (i32, i32) {
    %c0_i32 = arith.constant 0 : i32
    %c0_i32_0 = arith.constant 0 : i32
    %c0_i32_1 = arith.constant 0 : i32
    return %c0_i32, %c0_i32_0 : i32, i32
  }
  func.func @transform_2(%arg0: i32) -> (i32, i32) {
    %c0_i32 = arith.constant 0 : i32
    %c0_i32_0 = arith.constant 0 : i32
    %c0_i32_1 = arith.constant 0 : i32
    return %c0_i32, %c0_i32_0 : i32, i32
  }
  func.func @transform_3(%arg0: i32) -> (i32, i32) {
    %c0_i32 = arith.constant 0 : i32
    %c0_i32_0 = arith.constant 0 : i32
    %c0_i32_1 = arith.constant 0 : i32
    return %c0_i32, %c0_i32_0 : i32, i32
  }
  func.func @transform_4(%arg0: i32) -> (i32, i32) {
    %c0_i32 = arith.constant 0 : i32
    %c0_i32_0 = arith.constant 0 : i32
    %c0_i32_1 = arith.constant 0 : i32
    return %c0_i32, %c0_i32_0 : i32, i32
  }
  func.func @transform_5(%arg0: i32) -> (i32, i32) {
    %c0_i32 = arith.constant 0 : i32
    %c0_i32_0 = arith.constant 0 : i32
    return %arg0, %c0_i32 : i32, i32
  }
}

</mosaic_0001>

<llo_original>
// kernel: pose_regressor.1
$region0: #{pose_regressor.1}
  #allocation0 [shape = 'u32[]', space=smem, size = 0x4, offset = 0x4, fixed_abs, tag = 'smem constant byte address 0x4 - core index']
  #allocation1 [shape = 'u32[72,128]{1,0:T(1,128)}', space=vmem, size = 0x9000, scoped, tag = 'internal scratch']
  %s0 = inlined_call_operand.vmem [shape: f32[16,32], index: 0, kind: input, shape index: {}]
  %s1 = inlined_call_operand.vmem [shape: bf16[32,1024], index: 1, kind: input, shape index: {}]
  %s2 = inlined_call_operand.vmem [shape: f32[1,1024], index: 2, kind: input, shape index: {}]
  %s3 = inlined_call_operand.vmem [shape: bf16[1024,128], index: 3, kind: input, shape index: {}]
  %s4 = inlined_call_operand.vmem [shape: f32[1,128], index: 4, kind: input, shape index: {}]
  %s5 = inlined_call_operand.vmem [shape: bf16[16,128], index: 5, kind: output, shape index: {}]
  %s6 = sld [smem:[#allocation0]]
  $region30: #{pose_regressor.1} parent=0
    _
  %s8 = ssub.s32 1, %s6
  %s9 = scalar_select 0, %s8, %s6
  // Predicated region
  $region2: #{pose_regressor.1} parent=0 // pred_check
    _
  $region3: #{pose_regressor.1} parent=0 // pred_check_branch
    %11 = sbr.rel (0) target = $region5
  $region4: #{pose_regressor.1} parent=0 // pred_region
    _
  $region5: #{pose_regressor.1} parent=0 // pred_fallthru
    _
  // Predicated region
  $region6: #{pose_regressor.1} parent=0 // pred_check
    _
  $region7: #{pose_regressor.1} parent=0 // pred_check_branch
    %13 = sbr.rel (0) target = $region9
  $region8: #{pose_regressor.1} parent=0 // pred_region
    _
  $region9: #{pose_regressor.1} parent=0 // pred_fallthru
    _
  // Predicated region
  $region10: #{pose_regressor.1} parent=0 // pred_check
    _
  $region11: #{pose_regressor.1} parent=0 // pred_check_branch
    %15 = sbr.rel (0) target = $region13
  $region12: #{pose_regressor.1} parent=0 // pred_region
    _
  $region13: #{pose_regressor.1} parent=0 // pred_fallthru
    _
  // Predicated region
  $region14: #{pose_regressor.1} parent=0 // pred_check
    _
  $region15: #{pose_regressor.1} parent=0 // pred_check_branch
    %17 = sbr.rel (0) target = $region17
  $region16: #{pose_regressor.1} parent=0 // pred_region
    _
  $region17: #{pose_regressor.1} parent=0 // pred_fallthru
    _
  // Predicated region
  $region18: #{pose_regressor.1} parent=0 // pred_check
    _
  $region19: #{pose_regressor.1} parent=0 // pred_check_branch
    %19 = sbr.rel (0) target = $region21
  $region20: #{pose_regressor.1} parent=0 // pred_region
    _
  $region21: #{pose_regressor.1} parent=0 // pred_fallthru
    _
  %v21 = vld [vmem:[%s0] sm:$0xff]
  %v22 = vld [vmem:[%s0 + $0x8] sm:$0xff]
  %v23 = vpack.c.bf16 %v22, %v21
  %v24 = vld [vmem:[%s1] sm:$0xff]
  %v25 = vld [vmem:[%s1 + $0x8] sm:$0xff]
  %v26 = vld [vmem:[%s1 + $0x10] sm:$0xff]
  %v27 = vld [vmem:[%s1 + $0x18] sm:$0xff]
  %v28 = vld [vmem:[%s1 + $0x20] sm:$0xff]
  %v29 = vld [vmem:[%s1 + $0x28] sm:$0xff]
  %v30 = vld [vmem:[%s1 + $0x30] sm:$0xff]
  %v31 = vld [vmem:[%s1 + $0x38] sm:$0xff]
  %v32 = vld [vmem:[%s1 + $0x40] sm:$0xff]
  %v33 = vld [vmem:[%s1 + $0x48] sm:$0xff]
  %v34 = vld [vmem:[%s1 + $0x50] sm:$0xff]
  %v35 = vld [vmem:[%s1 + $0x58] sm:$0xff]
  %v36 = vld [vmem:[%s1 + $0x60] sm:$0xff]
  %v37 = vld [vmem:[%s1 + $0x68] sm:$0xff]
  %v38 = vld [vmem:[%s1 + $0x70] sm:$0xff]
  %v39 = vld [vmem:[%s1 + $0x78] sm:$0xff]
  %v40 = vld [vmem:[%s2] sm:$0xff]
  %v42 = vperm.slane %v40, 0
  %v43 = vperm.slane %v40, 1
  %v44 = vperm.slane %v40, 2
  %v45 = vperm.slane %v40, 3
  %v46 = vperm.slane %v40, 4
  %v47 = vperm.slane %v40, 5
  %v48 = vperm.slane %v40, 6
  %v49 = vperm.slane %v40, 7
  %v74 = vunpack.c.l.b16 %v24
  %v75 = vunpack.c.h.b16 %v24
  %v76 = vunpack.c.l.b16 %v25
  %v77 = vunpack.c.h.b16 %v25
  %v78 = vunpack.c.l.b16 %v26
  %v79 = vunpack.c.h.b16 %v26
  %v80 = vunpack.c.l.b16 %v27
  %v81 = vunpack.c.h.b16 %v27
  %v82 = vunpack.c.l.b16 %v28
  %v83 = vunpack.c.h.b16 %v28
  %v84 = vunpack.c.l.b16 %v29
  %v85 = vunpack.c.h.b16 %v29
  %v86 = vunpack.c.l.b16 %v30
  %v87 = vunpack.c.h.b16 %v30
  %v88 = vunpack.c.l.b16 %v31
  %v89 = vunpack.c.h.b16 %v31
  %v90 = vunpack.c.l.b16 %v32
  %v91 = vunpack.c.h.b16 %v32
  %v92 = vunpack.c.l.b16 %v33
  %v93 = vunpack.c.h.b16 %v33
  %v94 = vunpack.c.l.b16 %v34
  %v95 = vunpack.c.h.b16 %v34
  %v96 = vunpack.c.l.b16 %v35
  %v97 = vunpack.c.h.b16 %v35
  %v98 = vunpack.c.l.b16 %v36
  %v99 = vunpack.c.h.b16 %v36
  %v100 = vunpack.c.l.b16 %v37
  %v101 = vunpack.c.h.b16 %v37
  %v102 = vunpack.c.l.b16 %v38
  %v103 = vunpack.c.h.b16 %v38
  %v104 = vunpack.c.l.b16 %v39
  %v105 = vunpack.c.h.b16 %v39
  %v106 = vpack.c.b16 %v82, %v74
  %v107 = vpack.c.b16 %v83, %v75
  %v108 = vpack.c.b16 %v84, %v76
  %v109 = vpack.c.b16 %v85, %v77
  %v110 = vpack.c.b16 %v86, %v78
  %v111 = vpack.c.b16 %v87, %v79
  %v112 = vpack.c.b16 %v88, %v80
  %v113 = vpack.c.b16 %v89, %v81
  %v114 = vpack.c.b16 %v98, %v90
  %v115 = vpack.c.b16 %v99, %v91
  %v116 = vpack.c.b16 %v100, %v92
  %v117 = vpack.c.b16 %v101, %v93
  %v118 = vpack.c.b16 %v102, %v94
  %v119 = vpack.c.b16 %v103, %v95
  %v120 = vpack.c.b16 %v104, %v96
  %v121 = vpack.c.b16 %v105, %v97
  %vm138 = vcmask 261120
  %v140 = vsel %vm138, %v23, 0
  %142 = vmatpush.bf16.msra.mxu0 0
  %143 = vmatpush.bf16.msra.mxu0 0
  %144 = vmatpush.bf16.msra.mxu0 0
  %145 = vmatpush.bf16.msra.mxu0 0
  %146 = vmatpush.bf16.msra.mxu0 0
  %147 = vmatpush.bf16.msra.mxu0 0
  %148 = vmatpush.bf16.msra.mxu0 %v114
  %149 = vmatpush.bf16.msra.mxu0 %v106
  %150 = vmatmul.bf16.gmra.mxu0 %v140
  %v151 = vpop.f32.mrf.mxu0
  %v152 = vadd.f32 %v42, %v151
  %v153 = vpop.f32.mrf.mxu0
  %v154 = vadd.f32 %v42, %v153
  %155 = vdwg.mxu0
  %156 = vmatpush.bf16.msra.mxu0 0
  %157 = vmatpush.bf16.msra.mxu0 0
  %158 = vmatpush.bf16.msra.mxu0 0
  %159 = vmatpush.bf16.msra.mxu0 0
  %160 = vmatpush.bf16.msra.mxu0 0
  %161 = vmatpush.bf16.msra.mxu0 0
  %162 = vmatpush.bf16.msra.mxu0 %v115
  %163 = vmatpush.bf16.msra.mxu0 %v107
  %164 = vmatmul.bf16.gmra.mxu0 %v140
  %v165 = vpop.f32.mrf.mxu0
  %v166 = vadd.f32 %v43, %v165
  %v167 = vpop.f32.mrf.mxu0
  %v168 = vadd.f32 %v43, %v167
  %169 = vdwg.mxu0
  %170 = vmatpush.bf16.msra.mxu0 0
  %171 = vmatpush.bf16.msra.mxu0 0
  %172 = vmatpush.bf16.msra.mxu0 0
  %173 = vmatpush.bf16.msra.mxu0 0
  %174 = vmatpush.bf16.msra.mxu0 0
  %175 = vmatpush.bf16.msra.mxu0 0
  %176 = vmatpush.bf16.msra.mxu0 %v116
  %177 = vmatpush.bf16.msra.mxu0 %v108
  %178 = vmatmul.bf16.gmra.mxu0 %v140
  %v179 = vpop.f32.mrf.mxu0
  %v180 = vadd.f32 %v44, %v179
  %v181 = vpop.f32.mrf.mxu0
  %v182 = vadd.f32 %v44, %v181
  %183 = vdwg.mxu0
  %184 = vmatpush.bf16.msra.mxu0 0
  %185 = vmatpush.bf16.msra.mxu0 0
  %186 = vmatpush.bf16.msra.mxu0 0
  %187 = vmatpush.bf16.msra.mxu0 0
  %188 = vmatpush.bf16.msra.mxu0 0
  %189 = vmatpush.bf16.msra.mxu0 0
  %190 = vmatpush.bf16.msra.mxu0 %v117
  %191 = vmatpush.bf16.msra.mxu0 %v109
  %192 = vmatmul.bf16.gmra.mxu0 %v140
  %v193 = vpop.f32.mrf.mxu0
  %v194 = vadd.f32 %v45, %v193
  %v195 = vpop.f32.mrf.mxu0
  %v196 = vadd.f32 %v45, %v195
  %197 = vdwg.mxu0
  %198 = vmatpush.bf16.msra.mxu0 0
  %199 = vmatpush.bf16.msra.mxu0 0
  %200 = vmatpush.bf16.msra.mxu0 0
  %201 = vmatpush.bf16.msra.mxu0 0
  %202 = vmatpush.bf16.msra.mxu0 0
  %203 = vmatpush.bf16.msra.mxu0 0
  %204 = vmatpush.bf16.msra.mxu0 %v118
  %205 = vmatpush.bf16.msra.mxu0 %v110
  %206 = vmatmul.bf16.gmra.mxu0 %v140
  %v207 = vpop.f32.mrf.mxu0
  %v208 = vadd.f32 %v46, %v207
  %v209 = vpop.f32.mrf.mxu0
  %v210 = vadd.f32 %v46, %v209
  %211 = vdwg.mxu0
  %212 = vmatpush.bf16.msra.mxu0 0
  %213 = vmatpush.bf16.msra.mxu0 0
  %214 = vmatpush.bf16.msra.mxu0 0
  %215 = vmatpush.bf16.msra.mxu0 0
  %216 = vmatpush.bf16.msra.mxu0 0
  %217 = vmatpush.bf16.msra.mxu0 0
  %218 = vmatpush.bf16.msra.mxu0 %v119
  %219 = vmatpush.bf16.msra.mxu0 %v111
  %220 = vmatmul.bf16.gmra.mxu0 %v140
  %v221 = vpop.f32.mrf.mxu0
  %v222 = vadd.f32 %v47, %v221
  %v223 = vpop.f32.mrf.mxu0
  %v224 = vadd.f32 %v47, %v223
  %225 = vdwg.mxu0
  %226 = vmatpush.bf16.msra.mxu0 0
  %227 = vmatpush.bf16.msra.mxu0 0
  %228 = vmatpush.bf16.msra.mxu0 0
  %229 = vmatpush.bf16.msra.mxu0 0
  %230 = vmatpush.bf16.msra.mxu0 0
  %231 = vmatpush.bf16.msra.mxu0 0
  %232 = vmatpush.bf16.msra.mxu0 %v120
  %233 = vmatpush.bf16.msra.mxu0 %v112
  %234 = vmatmul.bf16.gmra.mxu0 %v140
  %v235 = vpop.f32.mrf.mxu0
  %v236 = vadd.f32 %v48, %v235
  %v237 = vpop.f32.mrf.mxu0
  %v238 = vadd.f32 %v48, %v237
  %239 = vdwg.mxu0
  %240 = vmatpush.bf16.msra.mxu0 0
  %241 = vmatpush.bf16.msra.mxu0 0
  %242 = vmatpush.bf16.msra.mxu0 0
  %243 = vmatpush.bf16.msra.mxu0 0
  %244 = vmatpush.bf16.msra.mxu0 0
  %245 = vmatpush.bf16.msra.mxu0 0
  %246 = vmatpush.bf16.msra.mxu0 %v121
  %247 = vmatpush.bf16.msra.mxu0 %v113
  %248 = vmatmul.bf16.gmra.mxu0 %v140
  %v249 = vpop.f32.mrf.mxu0
  %v250 = vadd.f32 %v49, %v249
  %v251 = vpop.f32.mrf.mxu0
  %v252 = vadd.f32 %v49, %v251
  %253 = vdwg.mxu0
  %v254 = vmul.f32 %v152, %v152
  %v255 = vmul.f32 %v166, %v166
  %v256 = vmul.f32 %v180, %v180
  %v257 = vmul.f32 %v194, %v194
  %v258 = vmul.f32 %v208, %v208
  %v259 = vmul.f32 %v222, %v222
  %v260 = vmul.f32 %v236, %v236
  %v261 = vmul.f32 %v250, %v250
  %v262 = vmul.f32 %v154, %v154
  %v263 = vmul.f32 %v168, %v168
  %v264 = vmul.f32 %v182, %v182
  %v265 = vmul.f32 %v196, %v196
  %v266 = vmul.f32 %v210, %v210
  %v267 = vmul.f32 %v224, %v224
  %v268 = vmul.f32 %v238, %v238
  %v269 = vmul.f32 %v252, %v252
  %v270 = vmul.f32 %v152, %v254
  %v271 = vmul.f32 %v166, %v255
  %v272 = vmul.f32 %v180, %v256
  %v273 = vmul.f32 %v194, %v257
  %v274 = vmul.f32 %v208, %v258
  %v275 = vmul.f32 %v222, %v259
  %v276 = vmul.f32 %v236, %v260
  %v277 = vmul.f32 %v250, %v261
  %v278 = vmul.f32 %v154, %v262
  %v279 = vmul.f32 %v168, %v263
  %v280 = vmul.f32 %v182, %v264
  %v281 = vmul.f32 %v196, %v265
  %v282 = vmul.f32 %v210, %v266
  %v283 = vmul.f32 %v224, %v267
  %v284 = vmul.f32 %v238, %v268
  %v285 = vmul.f32 %v252, %v269
  %v286 = vmul.f32 %v270, 0.044715
  %v287 = vmul.f32 %v271, 0.044715
  %v288 = vmul.f32 %v272, 0.044715
  %v289 = vmul.f32 %v273, 0.044715
  %v290 = vmul.f32 %v274, 0.044715
  %v291 = vmul.f32 %v275, 0.044715
  %v292 = vmul.f32 %v276, 0.044715
  %v293 = vmul.f32 %v277, 0.044715
  %v294 = vmul.f32 %v278, 0.044715
  %v295 = vmul.f32 %v279, 0.044715
  %v296 = vmul.f32 %v280, 0.044715
  %v297 = vmul.f32 %v281, 0.044715
  %v298 = vmul.f32 %v282, 0.044715
  %v299 = vmul.f32 %v283, 0.044715
  %v300 = vmul.f32 %v284, 0.044715
  %v301 = vmul.f32 %v285, 0.044715
  %v302 = vadd.f32 %v152, %v286
  %v303 = vadd.f32 %v166, %v287
  %v304 = vadd.f32 %v180, %v288
  %v305 = vadd.f32 %v194, %v289
  %v306 = vadd.f32 %v208, %v290
  %v307 = vadd.f32 %v222, %v291
  %v308 = vadd.f32 %v236, %v292
  %v309 = vadd.f32 %v250, %v293
  %v310 = vadd.f32 %v154, %v294
  %v311 = vadd.f32 %v168, %v295
  %v312 = vadd.f32 %v182, %v296
  %v313 = vadd.f32 %v196, %v297
  %v314 = vadd.f32 %v210, %v298
  %v315 = vadd.f32 %v224, %v299
  %v316 = vadd.f32 %v238, %v300
  %v317 = vadd.f32 %v252, %v301
  %v318 = vmul.f32 %v302, 0.7978846
  %v319 = vmul.f32 %v303, 0.7978846
  %v320 = vmul.f32 %v304, 0.7978846
  %v321 = vmul.f32 %v305, 0.7978846
  %v322 = vmul.f32 %v306, 0.7978846
  %v323 = vmul.f32 %v307, 0.7978846
  %v324 = vmul.f32 %v308, 0.7978846
  %v325 = vmul.f32 %v309, 0.7978846
  %v326 = vmul.f32 %v310, 0.7978846
  %v327 = vmul.f32 %v311, 0.7978846
  %v328 = vmul.f32 %v312, 0.7978846
  %v329 = vmul.f32 %v313, 0.7978846
  %v330 = vmul.f32 %v314, 0.7978846
  %v331 = vmul.f32 %v315, 0.7978846
  %v332 = vmul.f32 %v316, 0.7978846
  %v333 = vmul.f32 %v317, 0.7978846
  %v334 = vtanh.pop %v318
  %v335 = vtanh.pop %v319
  %v336 = vtanh.pop %v320
  %v337 = vtanh.pop %v321
  %v338 = vtanh.pop %v322
  %v339 = vtanh.pop %v323
  %v340 = vtanh.pop %v324
  %v341 = vtanh.pop %v325
  %v342 = vtanh.pop %v326
  %v343 = vtanh.pop %v327
  %v344 = vtanh.pop %v328
  %v345 = vtanh.pop %v329
  %v346 = vtanh.pop %v330
  %v347 = vtanh.pop %v331
  %v348 = vtanh.pop %v332
  %v349 = vtanh.pop %v333
  %v350 = vadd.f32 %v334, 1.0
  %v351 = vadd.f32 %v335, 1.0
  %v352 = vadd.f32 %v336, 1.0
  %v353 = vadd.f32 %v337, 1.0
  %v354 = vadd.f32 %v338, 1.0
  %v355 = vadd.f32 %v339, 1.0
  %v356 = vadd.f32 %v340, 1.0
  %v357 = vadd.f32 %v341, 1.0
  %v358 = vadd.f32 %v342, 1.0
  %v359 = vadd.f32 %v343, 1.0
  %v360 = vadd.f32 %v344, 1.0
  %v361 = vadd.f32 %v345, 1.0
  %v362 = vadd.f32 %v346, 1.0
  %v363 = vadd.f32 %v347, 1.0
  %v364 = vadd.f32 %v348, 1.0
  %v365 = vadd.f32 %v349, 1.0
  %v366 = vmul.f32 %v350, 0.5
  %v367 = vmul.f32 %v351, 0.5
  %v368 = vmul.f32 %v352, 0.5
  %v369 = vmul.f32 %v353, 0.5
  %v370 = vmul.f32 %v354, 0.5
  %v371 = vmul.f32 %v355, 0.5
  %v372 = vmul.f32 %v356, 0.5
  %v373 = vmul.f32 %v357, 0.5
  %v374 = vmul.f32 %v358, 0.5
  %v375 = vmul.f32 %v359, 0.5
  %v376 = vmul.f32 %v360, 0.5
  %v377 = vmul.f32 %v361, 0.5
  %v378 = vmul.f32 %v362, 0.5
  %v379 = vmul.f32 %v363, 0.5
  %v380 = vmul.f32 %v364, 0.5
  %v381 = vmul.f32 %v365, 0.5
  %v382 = vmul.f32 %v152, %v366
  %v383 = vmul.f32 %v166, %v367
  %v384 = vmul.f32 %v180, %v368
  %v385 = vmul.f32 %v194, %v369
  %v386 = vmul.f32 %v208, %v370
  %v387 = vmul.f32 %v222, %v371
  %v388 = vmul.f32 %v236, %v372
  %v389 = vmul.f32 %v250, %v373
  %v390 = vmul.f32 %v154, %v374
  %v391 = vmul.f32 %v168, %v375
  %v392 = vmul.f32 %v182, %v376
  %v393 = vmul.f32 %v196, %v377
  %v394 = vmul.f32 %v210, %v378
  %v395 = vmul.f32 %v224, %v379
  %v396 = vmul.f32 %v238, %v380
  %v397 = vmul.f32 %v252, %v381
  %v398 = vpack.c.bf16 %v390, %v382
  %v399 = vpack.c.bf16 %v391, %v383
  %v400 = vpack.c.bf16 %v392, %v384
  %v401 = vpack.c.bf16 %v393, %v385
  %v402 = vpack.c.bf16 %v394, %v386
  %v403 = vpack.c.bf16 %v395, %v387
  %v404 = vpack.c.bf16 %v396, %v388
  %v405 = vpack.c.bf16 %v397, %v389
  %v406 = vld [vmem:[%s3] sm:$0xf]
  %v407 = vld [vmem:[%s3 + $0x4] sm:$0xf]
  %v408 = vld [vmem:[%s3 + $0x8] sm:$0xf]
  %v409 = vld [vmem:[%s3 + $0xc] sm:$0xf]
  %v410 = vld [vmem:[%s3 + $0x10] sm:$0xf]
  %v411 = vld [vmem:[%s3 + $0x14] sm:$0xf]
  %v412 = vld [vmem:[%s3 + $0x18] sm:$0xf]
  %v413 = vld [vmem:[%s3 + $0x1c] sm:$0xf]
  %v414 = vld [vmem:[%s3 + $0x20] sm:$0xf]
  %v415 = vld [vmem:[%s3 + $0x24] sm:$0xf]
  %v416 = vld [vmem:[%s3 + $0x28] sm:$0xf]
  %v417 = vld [vmem:[%s3 + $0x2c] sm:$0xf]
  %v418 = vld [vmem:[%s3 + $0x30] sm:$0xf]
  %v419 = vld [vmem:[%s3 + $0x34] sm:$0xf]
  %v420 = vld [vmem:[%s3 + $0x38] sm:$0xf]
  %v421 = vld [vmem:[%s3 + $0x3c] sm:$0xf]
  %v422 = vld [vmem:[%s3 + $0x40] sm:$0xf]
  %v423 = vld [vmem:[%s3 + $0x44] sm:$0xf]
  %v424 = vld [vmem:[%s3 + $0x48] sm:$0xf]
  %v425 = vld [vmem:[%s3 + $0x4c] sm:$0xf]
  %v426 = vld [vmem:[%s3 + $0x50] sm:$0xf]
  %v427 = vld [vmem:[%s3 + $0x54] sm:$0xf]
  %v428 = vld [vmem:[%s3 + $0x58] sm:$0xf]
  %v429 = vld [vmem:[%s3 + $0x5c] sm:$0xf]
  %v430 = vld [vmem:[%s3 + $0x60] sm:$0xf]
  %v431 = vld [vmem:[%s3 + $0x64] sm:$0xf]
  %v432 = vld [vmem:[%s3 + $0x68] sm:$0xf]
  %v433 = vld [vmem:[%s3 + $0x6c] sm:$0xf]
  %v434 = vld [vmem:[%s3 + $0x70] sm:$0xf]
  %v435 = vld [vmem:[%s3 + $0x74] sm:$0xf]
  %v436 = vld [vmem:[%s3 + $0x78] sm:$0xf]
  %v437 = vld [vmem:[%s3 + $0x7c] sm:$0xf]
  %v438 = vld [vmem:[%s3 + $0x80] sm:$0xf]
  %v439 = vld [vmem:[%s3 + $0x84] sm:$0xf]
  %v440 = vld [vmem:[%s3 + $0x88] sm:$0xf]
  %v441 = vld [vmem:[%s3 + $0x8c] sm:$0xf]
  %v442 = vld [vmem:[%s3 + $0x90] sm:$0xf]
  %v443 = vld [vmem:[%s3 + $0x94] sm:$0xf]
  %v444 = vld [vmem:[%s3 + $0x98] sm:$0xf]
  %v445 = vld [vmem:[%s3 + $0x9c] sm:$0xf]
  %v446 = vld [vmem:[%s3 + $0xa0] sm:$0xf]
  %v447 = vld [vmem:[%s3 + $0xa4] sm:$0xf]
  %v448 = vld [vmem:[%s3 + $0xa8] sm:$0xf]
  %v449 = vld [vmem:[%s3 + $0xac] sm:$0xf]
  %v450 = vld [vmem:[%s3 + $0xb0] sm:$0xf]
  %v451 = vld [vmem:[%s3 + $0xb4] sm:$0xf]
  %v452 = vld [vmem:[%s3 + $0xb8] sm:$0xf]
  %v453 = vld [vmem:[%s3 + $0xbc] sm:$0xf]
  %v454 = vld [vmem:[%s3 + $0xc0] sm:$0xf]
  %v455 = vld [vmem:[%s3 + $0xc4] sm:$0xf]
  %v456 = vld [vmem:[%s3 + $0xc8] sm:$0xf]
  %v457 = vld [vmem:[%s3 + $0xcc] sm:$0xf]
  %v458 = vld [vmem:[%s3 + $0xd0] sm:$0xf]
  %v459 = vld [vmem:[%s3 + $0xd4] sm:$0xf]
  %v460 = vld [vmem:[%s3 + $0xd8] sm:$0xf]
  %v461 = vld [vmem:[%s3 + $0xdc] sm:$0xf]
  %v462 = vld [vmem:[%s3 + $0xe0] sm:$0xf]
  %v463 = vld [vmem:[%s3 + $0xe4] sm:$0xf]
  %v464 = vld [vmem:[%s3 + $0xe8] sm:$0xf]
  %v465 = vld [vmem:[%s3 + $0xec] sm:$0xf]
  %v466 = vld [vmem:[%s3 + $0xf0] sm:$0xf]
  %v467 = vld [vmem:[%s3 + $0xf4] sm:$0xf]
  %v468 = vld [vmem:[%s3 + $0xf8] sm:$0xf]
  %v469 = vld [vmem:[%s3 + $0xfc] sm:$0xf]
  %v470 = vld [vmem:[%s3 + $0x100] sm:$0xf]
  %v471 = vld [vmem:[%s3 + $0x104] sm:$0xf]
  %v472 = vld [vmem:[%s3 + $0x108] sm:$0xf]
  %v473 = vld [vmem:[%s3 + $0x10c] sm:$0xf]
  %v474 = vld [vmem:[%s3 + $0x110] sm:$0xf]
  %v475 = vld [vmem:[%s3 + $0x114] sm:$0xf]
  %v476 = vld [vmem:[%s3 + $0x118] sm:$0xf]
  %v477 = vld [vmem:[%s3 + $0x11c] sm:$0xf]
  %v478 = vld [vmem:[%s3 + $0x120] sm:$0xf]
  %v479 = vld [vmem:[%s3 + $0x124] sm:$0xf]
  %v480 = vld [vmem:[%s3 + $0x128] sm:$0xf]
  %v481 = vld [vmem:[%s3 + $0x12c] sm:$0xf]
  %v482 = vld [vmem:[%s3 + $0x130] sm:$0xf]
  %v483 = vld [vmem:[%s3 + $0x134] sm:$0xf]
  %v484 = vld [vmem:[%s3 + $0x138] sm:$0xf]
  %v485 = vld [vmem:[%s3 + $0x13c] sm:$0xf]
  %v486 = vld [vmem:[%s3 + $0x140] sm:$0xf]
  %v487 = vld [vmem:[%s3 + $0x144] sm:$0xf]
  %v488 = vld [vmem:[%s3 + $0x148] sm:$0xf]
  %v489 = vld [vmem:[%s3 + $0x14c] sm:$0xf]
  %v490 = vld [vmem:[%s3 + $0x150] sm:$0xf]
  %v491 = vld [vmem:[%s3 + $0x154] sm:$0xf]
  %v492 = vld [vmem:[%s3 + $0x158] sm:$0xf]
  %v493 = vld [vmem:[%s3 + $0x15c] sm:$0xf]
  %v494 = vld [vmem:[%s3 + $0x160] sm:$0xf]
  %v495 = vld [vmem:[%s3 + $0x164] sm:$0xf]
  %v496 = vld [vmem:[%s3 + $0x168] sm:$0xf]
  %v497 = vld [vmem:[%s3 + $0x16c] sm:$0xf]
  %v498 = vld [vmem:[%s3 + $0x170] sm:$0xf]
  %v499 = vld [vmem:[%s3 + $0x174] sm:$0xf]
  %v500 = vld [vmem:[%s3 + $0x178] sm:$0xf]
  %v501 = vld [vmem:[%s3 + $0x17c] sm:$0xf]
  %v502 = vld [vmem:[%s3 + $0x180] sm:$0xf]
  %v503 = vld [vmem:[%s3 + $0x184] sm:$0xf]
  %v504 = vld [vmem:[%s3 + $0x188] sm:$0xf]
  %v505 = vld [vmem:[%s3 + $0x18c] sm:$0xf]
  %v506 = vld [vmem:[%s3 + $0x190] sm:$0xf]
  %v507 = vld [vmem:[%s3 + $0x194] sm:$0xf]
  %v508 = vld [vmem:[%s3 + $0x198] sm:$0xf]
  %v509 = vld [vmem:[%s3 + $0x19c] sm:$0xf]
  %v510 = vld [vmem:[%s3 + $0x1a0] sm:$0xf]
  %v511 = vld [vmem:[%s3 + $0x1a4] sm:$0xf]
  %v512 = vld [vmem:[%s3 + $0x1a8] sm:$0xf]
  %v513 = vld [vmem:[%s3 + $0x1ac] sm:$0xf]
  %v514 = vld [vmem:[%s3 + $0x1b0] sm:$0xf]
  %v515 = vld [vmem:[%s3 + $0x1b4] sm:$0xf]
  %v516 = vld [vmem:[%s3 + $0x1b8] sm:$0xf]
  %v517 = vld [vmem:[%s3 + $0x1bc] sm:$0xf]
  %v518 = vld [vmem:[%s3 + $0x1c0] sm:$0xf]
  %v519 = vld [vmem:[%s3 + $0x1c4] sm:$0xf]
  %v520 = vld [vmem:[%s3 + $0x1c8] sm:$0xf]
  %v521 = vld [vmem:[%s3 + $0x1cc] sm:$0xf]
  %v522 = vld [vmem:[%s3 + $0x1d0] sm:$0xf]
  %v523 = vld [vmem:[%s3 + $0x1d4] sm:$0xf]
  %v524 = vld [vmem:[%s3 + $0x1d8] sm:$0xf]
  %v525 = vld [vmem:[%s3 + $0x1dc] sm:$0xf]
  %v526 = vld [vmem:[%s3 + $0x1e0] sm:$0xf]
  %v527 = vld [vmem:[%s3 + $0x1e4] sm:$0xf]
  %v528 = vld [vmem:[%s3 + $0x1e8] sm:$0xf]
  %v529 = vld [vmem:[%s3 + $0x1ec] sm:$0xf]
  %v530 = vld [vmem:[%s3 + $0x1f0] sm:$0xf]
  %v531 = vld [vmem:[%s3 + $0x1f4] sm:$0xf]
  %v532 = vld [vmem:[%s3 + $0x1f8] sm:$0xf]
  %v533 = vld [vmem:[%s3 + $0x1fc] sm:$0xf]
  %v534 = vld [vmem:[%s4] sm:$0x1]
  %v536 = vperm.slane %v534, 0
  %v666 = vunpack.c.l.b16 %v406
  %v667 = vunpack.c.l.b16 %v407
  %v668 = vunpack.c.l.b16 %v408
  %v669 = vunpack.c.l.b16 %v409
  %v670 = vunpack.c.l.b16 %v410
  %v671 = vunpack.c.l.b16 %v411
  %v672 = vunpack.c.l.b16 %v412
  %v673 = vunpack.c.l.b16 %v413
  %v674 = vunpack.c.l.b16 %v414
  %v675 = vunpack.c.l.b16 %v415
  %v676 = vunpack.c.l.b16 %v416
  %v677 = vunpack.c.l.b16 %v417
  %v678 = vunpack.c.l.b16 %v418
  %v679 = vunpack.c.l.b16 %v419
  %v680 = vunpack.c.l.b16 %v420
  %v681 = vunpack.c.l.b16 %v421
  %v682 = vunpack.c.l.b16 %v422
  %v683 = vunpack.c.l.b16 %v423
  %v684 = vunpack.c.l.b16 %v424
  %v685 = vunpack.c.l.b16 %v425
  %v686 = vunpack.c.l.b16 %v426
  %v687 = vunpack.c.l.b16 %v427
  %v688 = vunpack.c.l.b16 %v428
  %v689 = vunpack.c.l.b16 %v429
  %v690 = vunpack.c.l.b16 %v430
  %v691 = vunpack.c.l.b16 %v431
  %v692 = vunpack.c.l.b16 %v432
  %v693 = vunpack.c.l.b16 %v433
  %v694 = vunpack.c.l.b16 %v434
  %v695 = vunpack.c.l.b16 %v435
  %v696 = vunpack.c.l.b16 %v436
  %v697 = vunpack.c.l.b16 %v437
  %v698 = vunpack.c.l.b16 %v438
  %v699 = vunpack.c.l.b16 %v439
  %v700 = vunpack.c.l.b16 %v440
  %v701 = vunpack.c.l.b16 %v441
  %v702 = vunpack.c.l.b16 %v442
  %v703 = vunpack.c.l.b16 %v443
  %v704 = vunpack.c.l.b16 %v444
  %v705 = vunpack.c.l.b16 %v445
  %v706 = vunpack.c.l.b16 %v446
  %v707 = vunpack.c.l.b16 %v447
  %v708 = vunpack.c.l.b16 %v448
  %v709 = vunpack.c.l.b16 %v449
  %v710 = vunpack.c.l.b16 %v450
  %v711 = vunpack.c.l.b16 %v451
  %v712 = vunpack.c.l.b16 %v452
  %v713 = vunpack.c.l.b16 %v453
  %v714 = vunpack.c.l.b16 %v454
  %v715 = vunpack.c.l.b16 %v455
  %v716 = vunpack.c.l.b16 %v456
  %v717 = vunpack.c.l.b16 %v457
  %v718 = vunpack.c.l.b16 %v458
  %v719 = vunpack.c.l.b16 %v459
  %v720 = vunpack.c.l.b16 %v460
  %v721 = vunpack.c.l.b16 %v461
  %v722 = vunpack.c.l.b16 %v462
  %v723 = vunpack.c.l.b16 %v463
  %v724 = vunpack.c.l.b16 %v464
  %v725 = vunpack.c.l.b16 %v465
  %v726 = vunpack.c.l.b16 %v466
  %v727 = vunpack.c.l.b16 %v467
  %v728 = vunpack.c.l.b16 %v468
  %v729 = vunpack.c.l.b16 %v469
  %v730 = vunpack.c.l.b16 %v470
  %v731 = vunpack.c.l.b16 %v471
  %v732 = vunpack.c.l.b16 %v472
  %v733 = vunpack.c.l.b16 %v473
  %v734 = vunpack.c.l.b16 %v474
  %v735 = vunpack.c.l.b16 %v475
  %v736 = vunpack.c.l.b16 %v476
  %v737 = vunpack.c.l.b16 %v477
  %v738 = vunpack.c.l.b16 %v478
  %v739 = vunpack.c.l.b16 %v479
  %v740 = vunpack.c.l.b16 %v480
  %v741 = vunpack.c.l.b16 %v481
  %v742 = vunpack.c.l.b16 %v482
  %v743 = vunpack.c.l.b16 %v483
  %v744 = vunpack.c.l.b16 %v484
  %v745 = vunpack.c.l.b16 %v485
  %v746 = vunpack.c.l.b16 %v486
  %v747 = vunpack.c.l.b16 %v487
  %v748 = vunpack.c.l.b16 %v488
  %v749 = vunpack.c.l.b16 %v489
  %v750 = vunpack.c.l.b16 %v490
  %v751 = vunpack.c.l.b16 %v491
  %v752 = vunpack.c.l.b16 %v492
  %v753 = vunpack.c.l.b16 %v493
  %v754 = vunpack.c.l.b16 %v494
  %v755 = vunpack.c.l.b16 %v495
  %v756 = vunpack.c.l.b16 %v496
  %v757 = vunpack.c.l.b16 %v497
  %v758 = vunpack.c.l.b16 %v498
  %v759 = vunpack.c.l.b16 %v499
  %v760 = vunpack.c.l.b16 %v500
  %v761 = vunpack.c.l.b16 %v501
  %v762 = vunpack.c.l.b16 %v502
  %v763 = vunpack.c.l.b16 %v503
  %v764 = vunpack.c.l.b16 %v504
  %v765 = vunpack.c.l.b16 %v505
  %v766 = vunpack.c.l.b16 %v506
  %v767 = vunpack.c.l.b16 %v507
  %v768 = vunpack.c.l.b16 %v508
  %v769 = vunpack.c.l.b16 %v509
  %v770 = vunpack.c.l.b16 %v510
  %v771 = vunpack.c.l.b16 %v511
  %v772 = vunpack.c.l.b16 %v512
  %v773 = vunpack.c.l.b16 %v513
  %v774 = vunpack.c.l.b16 %v514
  %v775 = vunpack.c.l.b16 %v515
  %v776 = vunpack.c.l.b16 %v516
  %v777 = vunpack.c.l.b16 %v517
  %v778 = vunpack.c.l.b16 %v518
  %v779 = vunpack.c.l.b16 %v519
  %v780 = vunpack.c.l.b16 %v520
  %v781 = vunpack.c.l.b16 %v521
  %v782 = vunpack.c.l.b16 %v522
  %v783 = vunpack.c.l.b16 %v523
  %v784 = vunpack.c.l.b16 %v524
  %v785 = vunpack.c.l.b16 %v525
  %v786 = vunpack.c.l.b16 %v526
  %v787 = vunpack.c.l.b16 %v527
  %v788 = vunpack.c.l.b16 %v528
  %v789 = vunpack.c.l.b16 %v529
  %v790 = vunpack.c.l.b16 %v530
  %v791 = vunpack.c.l.b16 %v531
  %v792 = vunpack.c.l.b16 %v532
  %v793 = vunpack.c.l.b16 %v533
  %v794 = vpack.c.b16 %v667, %v666
  %v795 = vpack.c.b16 %v669, %v668
  %v796 = vpack.c.b16 %v671, %v670
  %v797 = vpack.c.b16 %v673, %v672
  %v798 = vpack.c.b16 %v675, %v674
  %v799 = vpack.c.b16 %v677, %v676
  %v800 = vpack.c.b16 %v679, %v678
  %v801 = vpack.c.b16 %v681, %v680
  %v802 = vpack.c.b16 %v683, %v682
  %v803 = vpack.c.b16 %v685, %v684
  %v804 = vpack.c.b16 %v687, %v686
  %v805 = vpack.c.b16 %v689, %v688
  %v806 = vpack.c.b16 %v691, %v690
  %v807 = vpack.c.b16 %v693, %v692
  %v808 = vpack.c.b16 %v695, %v694
  %v809 = vpack.c.b16 %v697, %v696
  %v810 = vpack.c.b16 %v699, %v698
  %v811 = vpack.c.b16 %v701, %v700
  %v812 = vpack.c.b16 %v703, %v702
  %v813 = vpack.c.b16 %v705, %v704
  %v814 = vpack.c.b16 %v707, %v706
  %v815 = vpack.c.b16 %v709, %v708
  %v816 = vpack.c.b16 %v711, %v710
  %v817 = vpack.c.b16 %v713, %v712
  %v818 = vpack.c.b16 %v715, %v714
  %v819 = vpack.c.b16 %v717, %v716
  %v820 = vpack.c.b16 %v719, %v718
  %v821 = vpack.c.b16 %v721, %v720
  %v822 = vpack.c.b16 %v723, %v722
  %v823 = vpack.c.b16 %v725, %v724
  %v824 = vpack.c.b16 %v727, %v726
  %v825 = vpack.c.b16 %v729, %v728
  %v826 = vpack.c.b16 %v731, %v730
  %v827 = vpack.c.b16 %v733, %v732
  %v828 = vpack.c.b16 %v735, %v734
  %v829 = vpack.c.b16 %v737, %v736
  %v830 = vpack.c.b16 %v739, %v738
  %v831 = vpack.c.b16 %v741, %v740
  %v832 = vpack.c.b16 %v743, %v742
  %v833 = vpack.c.b16 %v745, %v744
  %v834 = vpack.c.b16 %v747, %v746
  %v835 = vpack.c.b16 %v749, %v748
  %v836 = vpack.c.b16 %v751, %v750
  %v837 = vpack.c.b16 %v753, %v752
  %v838 = vpack.c.b16 %v755, %v754
  %v839 = vpack.c.b16 %v757, %v756
  %v840 = vpack.c.b16 %v759, %v758
  %v841 = vpack.c.b16 %v761, %v760
  %v842 = vpack.c.b16 %v763, %v762
  %v843 = vpack.c.b16 %v765, %v764
  %v844 = vpack.c.b16 %v767, %v766
  %v845 = vpack.c.b16 %v769, %v768
  %v846 = vpack.c.b16 %v771, %v770
  %v847 = vpack.c.b16 %v773, %v772
  %v848 = vpack.c.b16 %v775, %v774
  %v849 = vpack.c.b16 %v777, %v776
  %v850 = vpack.c.b16 %v779, %v778
  %v851 = vpack.c.b16 %v781, %v780
  %v852 = vpack.c.b16 %v783, %v782
  %v853 = vpack.c.b16 %v785, %v784
  %v854 = vpack.c.b16 %v787, %v786
  %v855 = vpack.c.b16 %v789, %v788
  %v856 = vpack.c.b16 %v791, %v790
  %v857 = vpack.c.b16 %v793, %v792
  %922 = vmatpush.bf16.msra.mxu0 %v801
  %923 = vmatpush.bf16.msra.mxu0 %v800
  %924 = vmatpush.bf16.msra.mxu0 %v799
  %925 = vmatpush.bf16.msra.mxu0 %v798
  %926 = vmatpush.bf16.msra.mxu0 %v797
  %927 = vmatpush.bf16.msra.mxu0 %v796
  %928 = vmatpush.bf16.msra.mxu0 %v795
  %929 = vmatpush.bf16.msra.mxu0 %v794
  %930 = vmatmul.bf16.gmra.mxu0 %v398
  %v931 = vpop.f32.mrf.mxu0
  %v932 = vadd.f32 %v536, %v931
  %v933 = vpop.f32.mrf.mxu0
  %v934 = vadd.f32 %v536, %v933
  %935 = vdwg.mxu0
  %936 = vmatpush.bf16.msra.mxu0 %v809
  %937 = vmatpush.bf16.msra.mxu0 %v808
  %938 = vmatpush.bf16.msra.mxu0 %v807
  %939 = vmatpush.bf16.msra.mxu0 %v806
  %940 = vmatpush.bf16.msra.mxu0 %v805
  %941 = vmatpush.bf16.msra.mxu0 %v804
  %942 = vmatpush.bf16.msra.mxu0 %v803
  %943 = vmatpush.bf16.msra.mxu0 %v802
  %944 = vmatmul.bf16.gmra.mxu0 %v399
  %v945 = vpop.f32.mrf.mxu0
  %v946 = vadd.f32 %v932, %v945
  %v947 = vpop.f32.mrf.mxu0
  %v948 = vadd.f32 %v934, %v947
  %949 = vdwg.mxu0
  %950 = vmatpush.bf16.msra.mxu0 %v817
  %951 = vmatpush.bf16.msra.mxu0 %v816
  %952 = vmatpush.bf16.msra.mxu0 %v815
  %953 = vmatpush.bf16.msra.mxu0 %v814
  %954 = vmatpush.bf16.msra.mxu0 %v813
  %955 = vmatpush.bf16.msra.mxu0 %v812
  %956 = vmatpush.bf16.msra.mxu0 %v811
  %957 = vmatpush.bf16.msra.mxu0 %v810
  %958 = vmatmul.bf16.gmra.mxu0 %v400
  %v959 = vpop.f32.mrf.mxu0
  %v960 = vadd.f32 %v946, %v959
  %v961 = vpop.f32.mrf.mxu0
  %v962 = vadd.f32 %v948, %v961
  %963 = vdwg.mxu0
  %964 = vmatpush.bf16.msra.mxu0 %v825
  %965 = vmatpush.bf16.msra.mxu0 %v824
  %966 = vmatpush.bf16.msra.mxu0 %v823
  %967 = vmatpush.bf16.msra.mxu0 %v822
  %968 = vmatpush.bf16.msra.mxu0 %v821
  %969 = vmatpush.bf16.msra.mxu0 %v820
  %970 = vmatpush.bf16.msra.mxu0 %v819
  %971 = vmatpush.bf16.msra.mxu0 %v818
  %972 = vmatmul.bf16.gmra.mxu0 %v401
  %v973 = vpop.f32.mrf.mxu0
  %v974 = vadd.f32 %v960, %v973
  %v975 = vpop.f32.mrf.mxu0
  %v976 = vadd.f32 %v962, %v975
  %977 = vdwg.mxu0
  %978 = vmatpush.bf16.msra.mxu0 %v833
  %979 = vmatpush.bf16.msra.mxu0 %v832
  %980 = vmatpush.bf16.msra.mxu0 %v831
  %981 = vmatpush.bf16.msra.mxu0 %v830
  %982 = vmatpush.bf16.msra.mxu0 %v829
  %983 = vmatpush.bf16.msra.mxu0 %v828
  %984 = vmatpush.bf16.msra.mxu0 %v827
  %985 = vmatpush.bf16.msra.mxu0 %v826
  %986 = vmatmul.bf16.gmra.mxu0 %v402
  %v987 = vpop.f32.mrf.mxu0
  %v988 = vadd.f32 %v974, %v987
  %v989 = vpop.f32.mrf.mxu0
  %v990 = vadd.f32 %v976, %v989
  %991 = vdwg.mxu0
  %992 = vmatpush.bf16.msra.mxu0 %v841
  %993 = vmatpush.bf16.msra.mxu0 %v840
  %994 = vmatpush.bf16.msra.mxu0 %v839
  %995 = vmatpush.bf16.msra.mxu0 %v838
  %996 = vmatpush.bf16.msra.mxu0 %v837
  %997 = vmatpush.bf16.msra.mxu0 %v836
  %998 = vmatpush.bf16.msra.mxu0 %v835
  %999 = vmatpush.bf16.msra.mxu0 %v834
  %1000 = vmatmul.bf16.gmra.mxu0 %v403
  %v1001 = vpop.f32.mrf.mxu0
  %v1002 = vadd.f32 %v988, %v1001
  %v1003 = vpop.f32.mrf.mxu0
  %v1004 = vadd.f32 %v990, %v1003
  %1005 = vdwg.mxu0
  %1006 = vmatpush.bf16.msra.mxu0 %v849
  %1007 = vmatpush.bf16.msra.mxu0 %v848
  %1008 = vmatpush.bf16.msra.mxu0 %v847
  %1009 = vmatpush.bf16.msra.mxu0 %v846
  %1010 = vmatpush.bf16.msra.mxu0 %v845
  %1011 = vmatpush.bf16.msra.mxu0 %v844
  %1012 = vmatpush.bf16.msra.mxu0 %v843
  %1013 = vmatpush.bf16.msra.mxu0 %v842
  %1014 = vmatmul.bf16.gmra.mxu0 %v404
  %v1015 = vpop.f32.mrf.mxu0
  %v1016 = vadd.f32 %v1002, %v1015
  %v1017 = vpop.f32.mrf.mxu0
  %v1018 = vadd.f32 %v1004, %v1017
  %1019 = vdwg.mxu0
  %1020 = vmatpush.bf16.msra.mxu0 %v857
  %1021 = vmatpush.bf16.msra.mxu0 %v856
  %1022 = vmatpush.bf16.msra.mxu0 %v855
  %1023 = vmatpush.bf16.msra.mxu0 %v854
  %1024 = vmatpush.bf16.msra.mxu0 %v853
  %1025 = vmatpush.bf16.msra.mxu0 %v852
  %1026 = vmatpush.bf16.msra.mxu0 %v851
  %1027 = vmatpush.bf16.msra.mxu0 %v850
  %1028 = vmatmul.bf16.gmra.mxu0 %v405
  %v1029 = vpop.f32.mrf.mxu0
  %v1030 = vadd.f32 %v1016, %v1029
  %v1031 = vpop.f32.mrf.mxu0
  %v1032 = vadd.f32 %v1018, %v1031
  %1033 = vdwg.mxu0
  %v1034 = vpack.c.bf16 %v1030, %v1030
  %v1035 = vpack.c.bf16 %v1032, %v1032
  %1036 = vst [vmem:[%s5] sm:$0xf] %v1034
  %1037 = vst [vmem:[%s5 + $0x4] sm:$0xf] %v1035
  // Predicated region
  $region22: #{pose_regressor.1} parent=0 // pred_check
    _
  $region23: #{pose_regressor.1} parent=0 // pred_check_branch
    %1039 = sbr.rel (0) target = $region25
  $region24: #{pose_regressor.1} parent=0 // pred_region
    _
  $region25: #{pose_regressor.1} parent=0 // pred_fallthru
    _
  // Predicated region
  $region26: #{pose_regressor.1} parent=0 // pred_check
    _
  $region27: #{pose_regressor.1} parent=0 // pred_check_branch
    %1041 = sbr.rel (0) target = $region29
  $region28: #{pose_regressor.1} parent=0 // pred_region
    _
  $region29: #{pose_regressor.1} parent=0 // pred_fallthru
    _

</llo_original>
